<compile_context>
chip_gen: v6e
topology: v6e:2x2x1
jax: 0.10.0
libtpu: 0.0.40
codegen_flags: <defaults>
</compile_context>

<pallas_src>
import functools
import math

import jax
import jax.numpy as jnp
from jax.experimental import pallas as pl
from jax.experimental.pallas import tpu as pltpu

EPS = 1e-07
LANE = 128


def _cdiv(a, b):
    return -(-a // b)


def _round_up(v, m):
    return ((v + m - 1) // m) * m


def _nce_denominator_kernel(x_ref, out_ref, *, shift):
    """Writes this tile's partial value of  -sum(log(x + shift))."""
    x = x_ref[...].astype(jnp.float32)            # (tile_r, 128), lane-dense
    neg_log = -jnp.log(x + shift)                 # one EUP log per element
    # two-stage reduce: sublane adds first, then one cross-lane reduce
    partial = jnp.sum(jnp.sum(neg_log, axis=0, keepdims=True))
    out_ref[...] = jnp.full(out_ref.shape, partial, dtype=out_ref.dtype)


def nce_criterion(x, targets, nLem):
    """Pallas TPU implementation of NCECriterion(nLem).forward(x, targets)."""
    del targets  # unused by the reference forward
    B, D = x.shape
    K = D - 1
    c = float(K) * (1.0 / float(nLem))            # K * Pns == K * Pnt
    shift = c + EPS

    # --- tiny terms handled outside the kernel -------------------------------
    # column-0 numerator:  sum_rows log(x[:, 0])   (B elements, plain JAX)
    col0_sum = jnp.sum(jnp.log(x[:, 0].astype(jnp.float32)))
    # noise numerator constant:  B * K * log(c)   (guard K == 0 degenerate case)
    noise_const = float(B) * float(K) * math.log(c) if K > 0 else 0.0

    # --- lane-dense layout + tile sizing --------------------------------------
    itemsize = jnp.dtype(x.dtype).itemsize
    min_sub = {4: 8, 2: 16, 1: 32}.get(itemsize, 8)   # sublane minimum per dtype

    N = B * D
    rows_needed = _cdiv(N, LANE)

    # VMEM live-set budget: 2x double-buffered native-dtype input tile plus
    # ~3 full-block f32 temporaries (cast / add / neg-log) per step.
    budget_bytes = 20 * 1024 * 1024
    bytes_per_row_live = LANE * (2 * itemsize + 3 * 4)
    cap_rows = max(min_sub,
                   (budget_bytes // bytes_per_row_live) // min_sub * min_sub)

    # Prefer >= 4 grid steps (when there is enough data) so the "parallel"
    # axis shards across both TensorCores on v7x; never exceed the VMEM cap.
    target_tiles = 4
    tile_r = _round_up(_cdiv(rows_needed, target_tiles), min_sub)
    tile_r = max(min_sub, min(cap_rows, tile_r))

    num_tiles = _cdiv(rows_needed, tile_r)
    rows_pad = num_tiles * tile_r
    pad_count = rows_pad * LANE - N

    x_flat = x.reshape(-1)
    if pad_count:
        # pad value 1.0: each pad element contributes -log(1 + c + eps);
        # this is folded back in `pad_term` below (no in-kernel masking).
        x_flat = jnp.pad(x_flat, (0, pad_count), constant_values=1.0)
    x2d = x_flat.reshape(rows_pad, LANE)

    kernel = functools.partial(_nce_denominator_kernel, shift=shift)

    cost = pl.CostEstimate(
        flops=int(3 * rows_pad * LANE),
        transcendentals=int(rows_pad * LANE),
        bytes_accessed=int(rows_pad * LANE * itemsize
                           + num_tiles * 8 * 128 * 4),
    )

    partials = pl.pallas_call(
        kernel,
        out_shape=jax.ShapeDtypeStruct((num_tiles, 8, 128), jnp.float32),
        grid=(num_tiles,),
        in_specs=[pl.BlockSpec((tile_r, LANE), lambda i: (i, 0))],
        out_specs=pl.BlockSpec((1, 8, 128), lambda i: (i, 0, 0)),
        compiler_params=pltpu.CompilerParams(
            dimension_semantics=("parallel",),
            vmem_limit_bytes=40 * 1024 * 1024,
        ),
        cost_estimate=cost,
    )(x2d)

    kernel_total = jnp.sum(partials[:, 0, 0])

    # undo the padded elements' contribution (value 1.0 -> -log(1 + c + eps))
    pad_term = jnp.float32(pad_count) * jnp.log(jnp.float32(1.0)
                                                + jnp.float32(shift))

    total = kernel_total + pad_term + col0_sum + noise_const
    return -total / float(B)


def _nce_reference(x, nLem):
    # Pure-JAX mirror of the PyTorch forward, for a sanity check.
    B, D = x.shape
    K = D - 1
    Pnt = 1.0 / float(nLem)
    Pns = 1.0 / float(nLem)
    Pmt = x[:, 0]
    lnPmt = jnp.log(Pmt / (Pmt + K * Pnt + EPS))
    lnPon = jnp.log((K * Pns) / (x[:, 1:] + K * Pns + EPS))
    return -(jnp.sum(lnPmt) + jnp.sum(lnPon)) / B


if __name__ == "__main__":
    key = jax.random.PRNGKey(0)
    kx, kt = jax.random.split(key)

    nLem = 128          # number of memory-bank entries
    batch = 8
    K = 16              # noise samples per example -> x has K+1 columns

    # x: non-parametric softmax "p values" (strictly positive)
    x = jax.random.uniform(kx, (batch, K + 1), dtype=jnp.float32,
                           minval=0.01, maxval=1.0)
    targets = jax.random.randint(kt, (batch,), 0, nLem, dtype=jnp.int32)

    loss = nce_criterion(x, targets, nLem)
    jax.block_until_ready(loss)

    ref = _nce_reference(x, nLem)
    assert jnp.allclose(loss, ref, rtol=1e-5, atol=1e-5), (loss, ref)

    print("KERNEL_OK")
</pallas_src>

<mosaic_0001>
module attributes {stable_mosaic.version = 11 : i64} {
  func.func @_nce_denominator_kernel(%arg0: i32, %arg1: memref<8x128xf32, #tpu.memory_space<vmem>>, %arg2: memref<1x8x128xf32, #tpu.memory_space<vmem>>) attributes {dimension_semantics = [#tpu.dimension_semantics<parallel>], iteration_bounds = array<i64: 1>, scalar_prefetch = 0 : i64, scratch_operands = 0 : i64, tpu.core_type = #tpu.core_type<tc>, window_params = [{transform_indices = @transform_0, window_bounds = array<i64: 8, 128>}, {transform_indices = @transform_1, window_bounds = array<i64: 1, 8, 128>}]} {
    %c0 = arith.constant 0 : index
    %c0_0 = arith.constant 0 : index
    %0 = vector.load %arg1[%c0, %c0_0] : memref<8x128xf32, #tpu.memory_space<vmem>>, vector<8x128xf32>
    %cst = arith.constant 0.125000104 : f32
    %1 = vector.broadcast %cst : f32 to vector<8x128xf32>
    %2 = arith.addf %0, %1 : vector<8x128xf32>
    %3 = math.log %2 : vector<8x128xf32>
    %cst_1 = arith.constant 0.000000e+00 : f32
    %4 = vector.broadcast %cst_1 : f32 to vector<8x128xf32>
    %5 = arith.subf %4, %3 : vector<8x128xf32>
    %cst_2 = arith.constant dense<0.000000e+00> : vector<128xf32>
    %6 = vector.multi_reduction <add>, %5, %cst_2 [0] : vector<8x128xf32> to vector<128xf32>
    %7 = vector.shape_cast %6 : vector<128xf32> to vector<1x128xf32>
    %8 = vector.shape_cast %7 : vector<1x128xf32> to vector<1x1x128xf32>
    %cst_3 = arith.constant dense<0.000000e+00> : vector<1xf32>
    %9 = vector.multi_reduction <add>, %8, %cst_3 [1, 2] : vector<1x1x128xf32> to vector<1xf32>
    %10 = vector.shape_cast %9 : vector<1xf32> to vector<1x1x1xf32>
    %11 = vector.extract %10[0, 0, 0] : f32 from vector<1x1x1xf32>
    %12 = vector.broadcast %11 : f32 to vector<1x8x128xf32>
    %c0_4 = arith.constant 0 : index
    %c0_5 = arith.constant 0 : index
    %c0_6 = arith.constant 0 : index
    %13 = vector.load %arg2[%c0_4, %c0_5, %c0_6] : memref<1x8x128xf32, #tpu.memory_space<vmem>>, vector<1x8x128xf32>
    tpu.vector_store %arg2[%c0_4, %c0_5, %c0_6], %12 {strides = array<i32>} : memref<1x8x128xf32, #tpu.memory_space<vmem>>, vector<1x8x128xf32>,
    return
  }
  func.func @transform_0(%arg0: i32) -> (i32, i32) {
    %c0_i32 = arith.constant 0 : i32
    %c0_i32_0 = arith.constant 0 : i32
    return %arg0, %c0_i32 : i32, i32
  }
  func.func @transform_1(%arg0: i32) -> (i32, i32, i32) {
    %c0_i32 = arith.constant 0 : i32
    %c0_i32_0 = arith.constant 0 : i32
    %c0_i32_1 = arith.constant 0 : i32
    return %arg0, %c0_i32, %c0_i32_0 : i32, i32, i32
  }
}

</mosaic_0001>

<llo_original>
// kernel: tpu_custom_call.1
$region0: #{tpu_custom_call.1}
  #allocation0 [shape = 'u32[]', space=smem, size = 0x4, offset = 0x4, fixed_abs, tag = 'smem constant byte address 0x4 - core index']
  #allocation1 [shape = 'u32[144,128]{1,0:T(1,128)}', space=vmem, size = 0x12000, scoped, tag = 'internal scratch']
  %s0 = inlined_call_operand.hbm [shape: f32[8,128], index: 0, kind: input, shape index: {}]
  %s1 = inlined_call_operand.hbm [shape: f32[1,8,128], index: 1, kind: output, shape index: {}]
  %s2 = sld [smem:[#allocation0]]
  $region18: #{tpu_custom_call.1} parent=0
    _
  %s4 = ssub.s32 1, %s2
  %s5 = scalar_select 0, %s4, %s2
  $region1: #{tpu_custom_call.1} parent=0
    #allocation2 [shape = 'u8[4096]{0}', space=vmem, size = 0x1000, scoped, tag = 'input window, operand 0, single buffered']
    #allocation3 [shape = 's32[1]{0}', space=sflag, size = 0x4, scoped, tag = 'scoped memory for tpu_custom_call.1']
    #allocation4 [shape = 's32[1]{0}', space=sflag, size = 0x4, scoped, tag = 'scoped memory for tpu_custom_call.1']
    #allocation5 [shape = 'u8[4096]{0}', space=vmem, size = 0x1000, scoped, tag = 'output window, operand 0, single buffered']
    %6 = vsyncpa [#allocation3], 0
    %7 = vsyncpa [#allocation4], 0
    // Predicated region
    $region2: #{tpu_custom_call.1} parent=1 // pred_check
      _
    $region3: #{tpu_custom_call.1} parent=1 // pred_check_branch
      %9 = sbr.rel (0) target = $region5
    $region4: #{tpu_custom_call.1} parent=1 // pred_region
      %s11 = ssub.s32 128, 128
      %12 = vsyncadd [#allocation3], %s11
      %s14 = sshll.u32 [#allocation2], 4
      %s15 = int_to_ptr.vmem [resolvable:$true] %s14
      %17 = dma.hbm_to_vmem [thread:$0]  %s0, 128, %s15, [#allocation3]
    $region5: #{tpu_custom_call.1} parent=1 // pred_fallthru
      _
    // Predicated region
    $region6: #{tpu_custom_call.1} parent=1 // pred_check
      _
    $region7: #{tpu_custom_call.1} parent=1 // pred_check_branch
      %19 = sbr.rel (0) target = $region9
    $region8: #{tpu_custom_call.1} parent=1 // pred_region
      %20 = dma.done [#allocation3], 128
    $region9: #{tpu_custom_call.1} parent=1 // pred_fallthru
      _
    %v21 = vld [vmem:[#allocation2] sm:$0xff]
    %v22 = vadd.f32 %v21, 0.1250001
    %v23 = vlog2.pop %v22
    %v24 = vmul.f32 %v23, 0.6931472
    %v25 = vsub.f32 0.0, %v24
    %v26 = vrot.slane %v25, 4
    %v27 = vadd.f32 %v25, %v26
    %v28 = vrot.slane %v27, 2
    %v29 = vadd.f32 %v27, %v28
    %v30 = vrot.slane %v29, 1
    %v31 = vadd.f32 %v29, %v30
    %vm32 = vcmask 1040384
    %v33 = vsel %vm32, %v31, 0.0
    %34 = vadd.xlane.f32.xlu0 %v33
    %v35 = vpop.xlane.xlu0 %34
    %v36 = vrot.slane %v35, 4
    %v37 = vadd.f32 %v35, %v36
    %v38 = vrot.slane %v37, 2
    %v39 = vadd.f32 %v37, %v38
    %v40 = vrot.slane %v39, 1
    %v41 = vadd.f32 %v39, %v40
    %s42 = vtos %v41
    %v43 = vstv %s42
    %44 = vst [vmem:[#allocation5] sm:$0xff] %v43
    // Predicated region
    $region10: #{tpu_custom_call.1} parent=1 // pred_check
      _
    $region11: #{tpu_custom_call.1} parent=1 // pred_check_branch
      %46 = sbr.rel (0) target = $region13
    $region12: #{tpu_custom_call.1} parent=1 // pred_region
      %s48 = ssub.s32 128, 128
      %49 = vsyncadd [#allocation4], %s48
      %s51 = sshll.u32 [#allocation5], 4
      %s52 = int_to_ptr.vmem [resolvable:$true] %s51
      %54 = dma.vmem_to_hbm [thread:$0]  %s52, 128, %s1, [#allocation4]
    $region13: #{tpu_custom_call.1} parent=1 // pred_fallthru
      _
    // Predicated region
    $region14: #{tpu_custom_call.1} parent=1 // pred_check
      _
    $region15: #{tpu_custom_call.1} parent=1 // pred_check_branch
      %56 = sbr.rel (0) target = $region17
    $region16: #{tpu_custom_call.1} parent=1 // pred_region
      %57 = dma.done [#allocation4], 128
    $region17: #{tpu_custom_call.1} parent=1 // pred_fallthru
      _
    %58 = vsyncpa [#allocation3], 1
    %59 = vsyncpa [#allocation4], 1

</llo_original>
